<compile_context>
chip_gen: v7x
topology: tpu7x:2x2x1
jax: 0.10.0
libtpu: 0.0.40
codegen_flags: <defaults>
</compile_context>

<pallas_src>
import functools

import jax
import jax.numpy as jnp
import numpy as np
from jax.experimental import pallas as pl
from jax.experimental.pallas import tpu as pltpu


# ----------------------------- Pallas kernel --------------------------------

def _joint_kernel(idx_ref, eps_ref, tmean_ref, tlv_ref, w_ref, b_ref, out_ref,
                  *, K, N, p_cts, p_bin):
    """One lane-tile of the fused Encoder + CovariateModel + AdjacencyModel forward.

    idx_ref   : (3, tb)        int32   node ids for (edge end 0, edge end 1, covariate row)
    eps_ref   : (3, K+1, tb)   f32     reparam noise [pos eps (K rows); het eps (1 row)]
    tmean_ref : (K+1, N)       f32     [pos_mean^T ; het_mean^T]        (VMEM resident)
    tlv_ref   : (K+1, N)       f32     [pos_logvar^T ; het_logvar^T]    (VMEM resident)
    w_ref     : (p, K)         f32     nn.Linear weight (out, in)       (VMEM resident)
    b_ref     : (p, 1)         f32     nn.Linear bias                   (VMEM resident)
    out_ref   : (p+1, tb)      f32     [mean_cts ; proba_bin ; proba_adj] rows
    """
    p = p_cts + p_bin
    Kp1 = K + 1
    tb = out_ref.shape[-1]

    node_iota = jax.lax.broadcasted_iota(jnp.int32, (N, tb), 0)
    tmean = tmean_ref[...]
    tlv = tlv_ref[...]

    def draw(j):
        # Gather-by-one-hot on the MXU (exact for f32 tables), then reparameterize.
        idx_row = idx_ref[j:j + 1, :]                               # (1, tb) int32
        onehot = (node_iota == idx_row).astype(jnp.float32)         # (N, tb)
        mu = jnp.dot(tmean, onehot, preferred_element_type=jnp.float32)  # (K+1, tb)
        lv = jnp.dot(tlv, onehot, preferred_element_type=jnp.float32)    # (K+1, tb)
        return mu + jnp.exp(0.5 * lv) * eps_ref[j]                  # (K+1, tb)

    s0 = draw(0)                       # edge endpoint 0
    s1 = draw(1)                       # edge endpoint 1
    sX = draw(2)                       # covariate rows (het row is discarded below)

    p0, h0 = s0[:K], s0[K:Kp1]
    p1, h1 = s1[:K], s1[K:Kp1]
    pX = sX[:K]

    # CovariateModel: single MXU pass (p, K) @ (K, tb) + bias.
    lin = jnp.dot(w_ref[...], pX, preferred_element_type=jnp.float32) + b_ref[...]

    # AdjacencyModel logit: alpha_i + alpha_j + <z_i, z_j>  (sublane reduction -> XLU).
    adj = h0 + h1 + jnp.sum(p0 * p1, axis=0, keepdims=True)         # (1, tb)

    # Lane-dense stores to static sublane row slabs (no iota/where on the store path).
    if p_cts > 0:
        out_ref[0:p_cts, :] = lin[:p_cts, :]
    if p_bin > 0:
        out_ref[p_cts:p, :] = jax.nn.sigmoid(lin[p_cts:p, :])
    out_ref[p:p + 1, :] = jax.nn.sigmoid(adj)


def _pick_tile(sb):
    """Lane tile of SB: prefer 512/1024 with an even step count (megacore), else SB."""
    if sb % 128 != 0:
        return sb                      # small / ragged problems: single full-dim block
    for t in (512, 1024, 256, 128):
        if sb % t == 0 and (sb // t) % 2 == 0 and sb // t > 1:
            return t
    for t in (512, 1024, 256, 128):
        if sb % t == 0 and sb // t > 1:
            return t
    return sb


def _pallas_forward(idx, eps, tmean, tlv, w, b, *, K, N, p_cts, p_bin, tb=None):
    p = p_cts + p_bin
    Kp1 = K + 1
    SB = idx.shape[1]

    if tb is None:
        tb = _pick_tile(SB)
    assert SB % tb == 0, "flattened (n_samples*batch) must be divisible by the lane tile"
    assert tb == SB or tb % 128 == 0, "partial lane tiles must be 128-aligned"
    grid = (SB // tb,)

    kernel = functools.partial(_joint_kernel, K=K, N=N, p_cts=p_cts, p_bin=p_bin)

    # Bytes/flops actually moved with this layout (eps + idx + output stream; tables &
    # weights are resident and read once).
    cost = pl.CostEstimate(
        flops=SB * (6 * 2 * Kp1 * N + 2 * p * K + 2 * K + 6 * Kp1),
        transcendentals=SB * (3 * Kp1 + p_bin + 1),
        bytes_accessed=4 * (3 * SB + 3 * Kp1 * SB + 2 * Kp1 * N + p * K + p
                            + (p + 1) * SB),
    )

    return pl.pallas_call(
        kernel,
        out_shape=jax.ShapeDtypeStruct((p + 1, SB), jnp.float32),
        grid=grid,
        in_specs=[
            pl.BlockSpec((3, tb), lambda i: (0, i)),            # node indices (streamed)
            pl.BlockSpec((3, Kp1, tb), lambda i: (0, 0, i)),    # eps          (streamed)
            pl.BlockSpec((Kp1, N), lambda i: (0, 0)),           # mean table   (resident)
            pl.BlockSpec((Kp1, N), lambda i: (0, 0)),           # logvar table (resident)
            pl.BlockSpec((p, K), lambda i: (0, 0)),             # Linear W     (resident)
            pl.BlockSpec((p, 1), lambda i: (0, 0)),             # Linear b     (resident)
        ],
        out_specs=pl.BlockSpec((p + 1, tb), lambda i: (0, i)),  # combined output slab
        compiler_params=pltpu.CompilerParams(
            dimension_semantics=("parallel",)),                 # v7x: split lane tiles
        cost_estimate=cost,
    )(idx, eps, tmean, tlv, w, b)


# ------------------------------ JAX glue -------------------------------------

def init_params(key, K, N, p_cts, p_bin):
    k1, k2, k3, k4, k5, k6 = jax.random.split(key, 6)
    p = p_cts + p_bin
    return dict(
        pos_mean=0.5 * jax.random.normal(k1, (N, K), jnp.float32),
        pos_logvar=jnp.full((N, K), -1.0, jnp.float32)
                   + 0.1 * jax.random.normal(k2, (N, K), jnp.float32),
        het_mean=-1.0 + 0.5 * jax.random.normal(k3, (N, 1), jnp.float32),
        het_logvar=jnp.full((N, 1), -1.0, jnp.float32)
                   + 0.1 * jax.random.normal(k4, (N, 1), jnp.float32),
        W=jax.random.normal(k5, (p, K), jnp.float32) / np.sqrt(K),  # nn.Linear (out, in)
        b=0.1 * jax.random.normal(k6, (p,), jnp.float32),           # nn.Linear bias
    )


def joint_model_forward(params, i0, i1, iX, eps, n_samples, p_cts, p_bin, tb=None):
    S = n_samples
    B = i0.shape[0]
    N, K = params["pos_mean"].shape
    p = p_cts + p_bin
    SB = S * B
    Kp1 = K + 1

    # Node-index slab (3, SB): lanes ordered s-major (lane = s*B + b); indices are
    # replicated over samples (cheap: int32 only — the float tables are NOT replicated).
    def rep(idx):
        return jnp.broadcast_to(idx[None, :], (S, B)).reshape(SB)
    idx_packed = jnp.stack([rep(i0), rep(i1), rep(iX)], axis=0).astype(jnp.int32)

    # eps slab (3, K+1, SB): per stream [position eps (K rows); heterogeneity eps (1 row)].
    # The hetX row is a dummy (encoder(iX) heterogeneity is discarded in the model).
    def eps_stream(pe, he):
        return jnp.concatenate([pe.reshape(SB, K).T, he.reshape(SB, 1).T], axis=0)
    eps_packed = jnp.stack([
        eps_stream(eps["p0"], eps["h0"]),
        eps_stream(eps["p1"], eps["h1"]),
        eps_stream(eps["pX"], jnp.zeros((S, B, 1), jnp.float32)),
    ], axis=0)

    # VMEM-resident node-parameter tables (K+1, N) = [positions^T ; heterogeneity^T].
    # TODO(synk): for N too large for VMEM, switch the in-kernel one-hot gather to an
    # Element-indexed BlockSpec / manual DMA gather keyed on scalar-prefetched indices.
    tmean = jnp.concatenate([params["pos_mean"].T, params["het_mean"].T], axis=0)
    tlv = jnp.concatenate([params["pos_logvar"].T, params["het_logvar"].T], axis=0)

    w = params["W"]                    # (p, K)
    b = params["b"][:, None]           # (p, 1)

    out = _pallas_forward(idx_packed, eps_packed, tmean, tlv, w, b,
                          K=K, N=N, p_cts=p_cts, p_bin=p_bin, tb=tb)   # (p+1, SB)
    out = out.T.reshape(S, B, p + 1)
    return out[..., :p_cts], out[..., p_cts:p], out[..., p:]


def reference_forward(params, i0, i1, iX, eps, p_cts):
    def samp(mean, logvar, idx, e):
        return mean[idx][None] + jnp.exp(0.5 * logvar[idx][None]) * e

    p0 = samp(params["pos_mean"], params["pos_logvar"], i0, eps["p0"])
    h0 = samp(params["het_mean"], params["het_logvar"], i0, eps["h0"])
    p1 = samp(params["pos_mean"], params["pos_logvar"], i1, eps["p1"])
    h1 = samp(params["het_mean"], params["het_logvar"], i1, eps["h1"])
    pX = samp(params["pos_mean"], params["pos_logvar"], iX, eps["pX"])

    lin = jnp.einsum("sbk,pk->sbp", pX, params["W"]) + params["b"]
    mean_cts = lin[..., :p_cts]
    proba_bin = jax.nn.sigmoid(lin[..., p_cts:])
    proba_adj = jax.nn.sigmoid(h0 + h1 + jnp.sum(p0 * p1, axis=-1, keepdims=True))
    return mean_cts, proba_bin, proba_adj


# ------------------------------- main ----------------------------------------

if __name__ == "__main__":
    K, N, p_cts, p_bin, n_samples = 8, 32, 4, 4, 2
    B = 16   # number of sampled edges / covariate rows per minibatch

    key = jax.random.PRNGKey(0)
    k_par, k_i0, k_i1, k_iX, k_e = jax.random.split(key, 5)
    params = init_params(k_par, K, N, p_cts, p_bin)

    i0 = jax.random.randint(k_i0, (B,), 0, N)
    i1 = jax.random.randint(k_i1, (B,), 0, N)
    iX = jax.random.randint(k_iX, (B,), 0, N)

    ke1, ke2, ke3, ke4, ke5 = jax.random.split(k_e, 5)
    eps = dict(
        p0=jax.random.normal(ke1, (n_samples, B, K), jnp.float32),
        h0=jax.random.normal(ke2, (n_samples, B, 1), jnp.float32),
        p1=jax.random.normal(ke3, (n_samples, B, K), jnp.float32),
        h1=jax.random.normal(ke4, (n_samples, B, 1), jnp.float32),
        pX=jax.random.normal(ke5, (n_samples, B, K), jnp.float32),
    )
    # TODO(synk): reparameterization noise is drawn with jax.random in glue (matches
    # torch.randn in the vimc encoder) rather than pltpu.prng_* so the kernel stays
    # bit-comparable to the pure-JAX reference.

    out = joint_model_forward(params, i0, i1, iX, eps, n_samples, p_cts, p_bin)
    mean_cts, proba_bin, proba_adj = jax.block_until_ready(out)

    assert mean_cts.shape == (n_samples, B, p_cts)
    assert proba_bin.shape == (n_samples, B, p_bin)
    assert proba_adj.shape == (n_samples, B, 1)

    ref = reference_forward(params, i0, i1, iX, eps, p_cts)
    for got, want in zip((mean_cts, proba_bin, proba_adj), ref):
        np.testing.assert_allclose(np.asarray(got), np.asarray(want),
                                   rtol=1e-4, atol=1e-4)

    print("KERNEL_OK")
</pallas_src>

<mosaic_0001>
module attributes {stable_mosaic.version = 11 : i64} {
  func.func @_joint_kernel(%arg0: i32, %arg1: memref<3x32xi32, #tpu.memory_space<vmem>>, %arg2: memref<3x9x32xf32, #tpu.memory_space<vmem>>, %arg3: memref<9x32xf32, #tpu.memory_space<vmem>>, %arg4: memref<9x32xf32, #tpu.memory_space<vmem>>, %arg5: memref<8x8xf32, #tpu.memory_space<vmem>>, %arg6: memref<8x1xf32, #tpu.memory_space<vmem>>, %arg7: memref<9x32xf32, #tpu.memory_space<vmem>>) attributes {dimension_semantics = [#tpu.dimension_semantics<parallel>], iteration_bounds = array<i64: 1>, scalar_prefetch = 0 : i64, scratch_operands = 0 : i64, tpu.core_type = #tpu.core_type<tc>, window_params = [{transform_indices = @transform_0, window_bounds = array<i64: 3, 32>}, {transform_indices = @transform_1, window_bounds = array<i64: 3, 9, 32>}, {pipeline_mode = #tpu.pipeline_mode<synchronous>, transform_indices = @transform_2, window_bounds = array<i64: 9, 32>}, {pipeline_mode = #tpu.pipeline_mode<synchronous>, transform_indices = @transform_3, window_bounds = array<i64: 9, 32>}, {pipeline_mode = #tpu.pipeline_mode<synchronous>, transform_indices = @transform_4, window_bounds = array<i64: 8, 8>}, {pipeline_mode = #tpu.pipeline_mode<synchronous>, transform_indices = @transform_5, window_bounds = array<i64: 8, 1>}, {transform_indices = @transform_6, window_bounds = array<i64: 9, 32>}]} {
    %0 = tpu.iota {dimensions = array<i32: 0>} : vector<32x32xi32>
    %c0 = arith.constant 0 : index
    %c0_0 = arith.constant 0 : index
    %1 = vector.load %arg3[%c0, %c0_0] : memref<9x32xf32, #tpu.memory_space<vmem>>, vector<9x32xf32>
    %c0_1 = arith.constant 0 : index
    %c0_2 = arith.constant 0 : index
    %2 = vector.load %arg4[%c0_1, %c0_2] : memref<9x32xf32, #tpu.memory_space<vmem>>, vector<9x32xf32>
    %c0_3 = arith.constant 0 : index
    %c0_4 = arith.constant 0 : index
    %3 = vector.load %arg1[%c0_3, %c0_4] : memref<3x32xi32, #tpu.memory_space<vmem>>, vector<1x32xi32>
    %4 = vector.broadcast %3 : vector<1x32xi32> to vector<32x32xi32>
    %5 = arith.cmpi eq, %0, %4 : vector<32x32xi32>
    %6 = arith.extui %5 : vector<32x32xi1> to vector<32x32xi32>
    %7 = arith.sitofp %6 : vector<32x32xi32> to vector<32x32xf32>
    %cst = arith.constant dense<0.000000e+00> : vector<9x32xf32>
    %8 = tpu.matmul %1, %7, %cst {dimension_numbers = #tpu.dot_dimension_numbers<[1], [0], [0], [1], [0, 0, 1, 1], [], []>} : vector<9x32xf32>, vector<32x32xf32>, vector<9x32xf32> -> vector<9x32xf32>
    %cst_5 = arith.constant dense<0.000000e+00> : vector<9x32xf32>
    %9 = tpu.matmul %2, %7, %cst_5 {dimension_numbers = #tpu.dot_dimension_numbers<[1], [0], [0], [1], [0, 0, 1, 1], [], []>} : vector<9x32xf32>, vector<32x32xf32>, vector<9x32xf32> -> vector<9x32xf32>
    %cst_6 = arith.constant 5.000000e-01 : f32
    %10 = vector.broadcast %cst_6 : f32 to vector<9x32xf32>
    %11 = arith.mulf %10, %9 : vector<9x32xf32>
    %12 = math.exp %11 : vector<9x32xf32>
    %c0_7 = arith.constant 0 : index
    %c0_8 = arith.constant 0 : index
    %c0_9 = arith.constant 0 : index
    %13 = vector.load %arg2[%c0_7, %c0_8, %c0_9] : memref<3x9x32xf32, #tpu.memory_space<vmem>>, vector<1x9x32xf32>
    %14 = vector.shape_cast %13 : vector<1x9x32xf32> to vector<9x32xf32>
    %15 = arith.mulf %12, %14 : vector<9x32xf32>
    %16 = arith.addf %8, %15 : vector<9x32xf32>
    %c1 = arith.constant 1 : index
    %c0_10 = arith.constant 0 : index
    %17 = vector.load %arg1[%c1, %c0_10] : memref<3x32xi32, #tpu.memory_space<vmem>>, vector<1x32xi32>
    %18 = vector.broadcast %17 : vector<1x32xi32> to vector<32x32xi32>
    %19 = arith.cmpi eq, %0, %18 : vector<32x32xi32>
    %20 = arith.extui %19 : vector<32x32xi1> to vector<32x32xi32>
    %21 = arith.sitofp %20 : vector<32x32xi32> to vector<32x32xf32>
    %cst_11 = arith.constant dense<0.000000e+00> : vector<9x32xf32>
    %22 = tpu.matmul %1, %21, %cst_11 {dimension_numbers = #tpu.dot_dimension_numbers<[1], [0], [0], [1], [0, 0, 1, 1], [], []>} : vector<9x32xf32>, vector<32x32xf32>, vector<9x32xf32> -> vector<9x32xf32>
    %cst_12 = arith.constant dense<0.000000e+00> : vector<9x32xf32>
    %23 = tpu.matmul %2, %21, %cst_12 {dimension_numbers = #tpu.dot_dimension_numbers<[1], [0], [0], [1], [0, 0, 1, 1], [], []>} : vector<9x32xf32>, vector<32x32xf32>, vector<9x32xf32> -> vector<9x32xf32>
    %cst_13 = arith.constant 5.000000e-01 : f32
    %24 = vector.broadcast %cst_13 : f32 to vector<9x32xf32>
    %25 = arith.mulf %24, %23 : vector<9x32xf32>
    %26 = math.exp %25 : vector<9x32xf32>
    %c1_14 = arith.constant 1 : index
    %c0_15 = arith.constant 0 : index
    %c0_16 = arith.constant 0 : index
    %27 = vector.load %arg2[%c1_14, %c0_15, %c0_16] : memref<3x9x32xf32, #tpu.memory_space<vmem>>, vector<1x9x32xf32>
    %28 = vector.shape_cast %27 : vector<1x9x32xf32> to vector<9x32xf32>
    %29 = arith.mulf %26, %28 : vector<9x32xf32>
    %30 = arith.addf %22, %29 : vector<9x32xf32>
    %c2 = arith.constant 2 : index
    %c0_17 = arith.constant 0 : index
    %31 = vector.load %arg1[%c2, %c0_17] : memref<3x32xi32, #tpu.memory_space<vmem>>, vector<1x32xi32>
    %32 = vector.broadcast %31 : vector<1x32xi32> to vector<32x32xi32>
    %33 = arith.cmpi eq, %0, %32 : vector<32x32xi32>
    %34 = arith.extui %33 : vector<32x32xi1> to vector<32x32xi32>
    %35 = arith.sitofp %34 : vector<32x32xi32> to vector<32x32xf32>
    %cst_18 = arith.constant dense<0.000000e+00> : vector<9x32xf32>
    %36 = tpu.matmul %1, %35, %cst_18 {dimension_numbers = #tpu.dot_dimension_numbers<[1], [0], [0], [1], [0, 0, 1, 1], [], []>} : vector<9x32xf32>, vector<32x32xf32>, vector<9x32xf32> -> vector<9x32xf32>
    %cst_19 = arith.constant dense<0.000000e+00> : vector<9x32xf32>
    %37 = tpu.matmul %2, %35, %cst_19 {dimension_numbers = #tpu.dot_dimension_numbers<[1], [0], [0], [1], [0, 0, 1, 1], [], []>} : vector<9x32xf32>, vector<32x32xf32>, vector<9x32xf32> -> vector<9x32xf32>
    %cst_20 = arith.constant 5.000000e-01 : f32
    %38 = vector.broadcast %cst_20 : f32 to vector<9x32xf32>
    %39 = arith.mulf %38, %37 : vector<9x32xf32>
    %40 = math.exp %39 : vector<9x32xf32>
    %c2_21 = arith.constant 2 : index
    %c0_22 = arith.constant 0 : index
    %c0_23 = arith.constant 0 : index
    %41 = vector.load %arg2[%c2_21, %c0_22, %c0_23] : memref<3x9x32xf32, #tpu.memory_space<vmem>>, vector<1x9x32xf32>
    %42 = vector.shape_cast %41 : vector<1x9x32xf32> to vector<9x32xf32>
    %43 = arith.mulf %40, %42 : vector<9x32xf32>
    %44 = arith.addf %36, %43 : vector<9x32xf32>
    %45 = vector.extract_strided_slice %16 {offsets = [0, 0], sizes = [8, 32], strides = [1, 1]} : vector<9x32xf32> to vector<8x32xf32>
    %46 = vector.extract_strided_slice %16 {offsets = [8, 0], sizes = [1, 32], strides = [1, 1]} : vector<9x32xf32> to vector<1x32xf32>
    %47 = vector.extract_strided_slice %30 {offsets = [0, 0], sizes = [8, 32], strides = [1, 1]} : vector<9x32xf32> to vector<8x32xf32>
    %48 = vector.extract_strided_slice %30 {offsets = [8, 0], sizes = [1, 32], strides = [1, 1]} : vector<9x32xf32> to vector<1x32xf32>
    %49 = vector.extract_strided_slice %44 {offsets = [0, 0], sizes = [8, 32], strides = [1, 1]} : vector<9x32xf32> to vector<8x32xf32>
    %c0_24 = arith.constant 0 : index
    %c0_25 = arith.constant 0 : index
    %50 = vector.load %arg5[%c0_24, %c0_25] : memref<8x8xf32, #tpu.memory_space<vmem>>, vector<8x8xf32>
    %cst_26 = arith.constant dense<0.000000e+00> : vector<8x32xf32>
    %51 = tpu.matmul %50, %49, %cst_26 {dimension_numbers = #tpu.dot_dimension_numbers<[1], [0], [0], [1], [0, 0, 1, 1], [], []>} : vector<8x8xf32>, vector<8x32xf32>, vector<8x32xf32> -> vector<8x32xf32>
    %c0_27 = arith.constant 0 : index
    %c0_28 = arith.constant 0 : index
    %52 = vector.load %arg6[%c0_27, %c0_28] : memref<8x1xf32, #tpu.memory_space<vmem>>, vector<8x1xf32>
    %53 = vector.broadcast %52 : vector<8x1xf32> to vector<8x32xf32>
    %54 = arith.addf %51, %53 : vector<8x32xf32>
    %55 = arith.addf %46, %48 : vector<1x32xf32>
    %56 = arith.mulf %45, %47 : vector<8x32xf32>
    %cst_29 = arith.constant dense<0.000000e+00> : vector<32xf32>
    %57 = vector.multi_reduction <add>, %56, %cst_29 [0] : vector<8x32xf32> to vector<32xf32>
    %58 = vector.shape_cast %57 : vector<32xf32> to vector<1x32xf32>
    %59 = arith.addf %55, %58 : vector<1x32xf32>
    %60 = vector.extract_strided_slice %54 {offsets = [0, 0], sizes = [4, 32], strides = [1, 1]} : vector<8x32xf32> to vector<4x32xf32>
    %c0_30 = arith.constant 0 : index
    %c0_31 = arith.constant 0 : index
    %61 = vector.load %arg7[%c0_30, %c0_31] : memref<9x32xf32, #tpu.memory_space<vmem>>, vector<4x32xf32>
    tpu.vector_store %arg7[%c0_30, %c0_31], %60 {strides = array<i32>} : memref<9x32xf32, #tpu.memory_space<vmem>>, vector<4x32xf32>,
    %62 = vector.extract_strided_slice %54 {offsets = [4, 0], sizes = [4, 32], strides = [1, 1]} : vector<8x32xf32> to vector<4x32xf32>
    %63 = arith.negf %62 : vector<4x32xf32>
    %64 = math.exp %63 : vector<4x32xf32>
    %cst_32 = arith.constant 1.000000e+00 : f32
    %65 = vector.broadcast %cst_32 : f32 to vector<4x32xf32>
    %66 = arith.addf %65, %64 : vector<4x32xf32>
    %67 = arith.divf %65, %66 : vector<4x32xf32>
    %c4 = arith.constant 4 : index
    %c0_33 = arith.constant 0 : index
    %68 = vector.load %arg7[%c4, %c0_33] : memref<9x32xf32, #tpu.memory_space<vmem>>, vector<4x32xf32>
    tpu.vector_store %arg7[%c4, %c0_33], %67 {strides = array<i32>} : memref<9x32xf32, #tpu.memory_space<vmem>>, vector<4x32xf32>,
    %69 = arith.negf %59 : vector<1x32xf32>
    %70 = math.exp %69 : vector<1x32xf32>
    %cst_34 = arith.constant 1.000000e+00 : f32
    %71 = vector.broadcast %cst_34 : f32 to vector<1x32xf32>
    %72 = arith.addf %71, %70 : vector<1x32xf32>
    %73 = arith.divf %71, %72 : vector<1x32xf32>
    %c8 = arith.constant 8 : index
    %c0_35 = arith.constant 0 : index
    %74 = vector.load %arg7[%c8, %c0_35] : memref<9x32xf32, #tpu.memory_space<vmem>>, vector<1x32xf32>
    tpu.vector_store %arg7[%c8, %c0_35], %73 {strides = array<i32>} : memref<9x32xf32, #tpu.memory_space<vmem>>, vector<1x32xf32>,
    return
  }
  func.func @transform_0(%arg0: i32) -> (i32, i32) {
    %c0_i32 = arith.constant 0 : i32
    %c0_i32_0 = arith.constant 0 : i32
    return %c0_i32, %arg0 : i32, i32
  }
  func.func @transform_1(%arg0: i32) -> (i32, i32, i32) {
    %c0_i32 = arith.constant 0 : i32
    %c0_i32_0 = arith.constant 0 : i32
    %c0_i32_1 = arith.constant 0 : i32
    return %c0_i32, %c0_i32_0, %arg0 : i32, i32, i32
  }
  func.func @transform_2(%arg0: i32) -> (i32, i32) {
    %c0_i32 = arith.constant 0 : i32
    %c0_i32_0 = arith.constant 0 : i32
    %c0_i32_1 = arith.constant 0 : i32
    return %c0_i32, %c0_i32_0 : i32, i32
  }
  func.func @transform_3(%arg0: i32) -> (i32, i32) {
    %c0_i32 = arith.constant 0 : i32
    %c0_i32_0 = arith.constant 0 : i32
    %c0_i32_1 = arith.constant 0 : i32
    return %c0_i32, %c0_i32_0 : i32, i32
  }
  func.func @transform_4(%arg0: i32) -> (i32, i32) {
    %c0_i32 = arith.constant 0 : i32
    %c0_i32_0 = arith.constant 0 : i32
    %c0_i32_1 = arith.constant 0 : i32
    return %c0_i32, %c0_i32_0 : i32, i32
  }
  func.func @transform_5(%arg0: i32) -> (i32, i32) {
    %c0_i32 = arith.constant 0 : i32
    %c0_i32_0 = arith.constant 0 : i32
    %c0_i32_1 = arith.constant 0 : i32
    return %c0_i32, %c0_i32_0 : i32, i32
  }
  func.func @transform_6(%arg0: i32) -> (i32, i32) {
    %c0_i32 = arith.constant 0 : i32
    %c0_i32_0 = arith.constant 0 : i32
    return %c0_i32, %arg0 : i32, i32
  }
}

</mosaic_0001>

<llo_original>
// kernel: tpu_custom_call.1
$region0: #{tpu_custom_call.1}
  #allocation0 [shape = 'u32[]', space=smem, size = 0x4, offset = 0x4, fixed_abs, tag = 'smem constant byte address 0x4 - core index']
  #allocation1 [shape = 'u32[144,128]{1,0:T(1,128)}', space=vmem, size = 0x12000, scoped, tag = 'internal scratch']
  %s0 = inlined_call_operand.vmem [shape: s32[3,32], index: 0, kind: input, shape index: {}]
  %s1 = inlined_call_operand.vmem [shape: f32[3,9,32], index: 1, kind: input, shape index: {}]
  %s2 = inlined_call_operand.vmem [shape: f32[9,32], index: 2, kind: input, shape index: {}]
  %s3 = inlined_call_operand.vmem [shape: f32[9,32], index: 3, kind: input, shape index: {}]
  %s4 = inlined_call_operand.vmem [shape: f32[8,8], index: 4, kind: input, shape index: {}]
  %s5 = inlined_call_operand.vmem [shape: f32[8,1], index: 5, kind: input, shape index: {}]
  %s6 = inlined_call_operand.hbm [shape: f32[9,32], index: 6, kind: output, shape index: {}]
  %s7 = sld [smem:[#allocation0]]
  $region34: #{tpu_custom_call.1} parent=0
    _
  %s9 = ssub.s32 1, %s7
  %s10 = scalar_select 0, %s9, %s7
  $region1: #{tpu_custom_call.1} parent=0
    #allocation2 [shape = 'u8[8192]{0}', space=vmem, size = 0x2000, scoped, tag = 'output window, operand 0, single buffered']
    #allocation3 [shape = 's32[1]{0}', space=sflag, size = 0x4, scoped, tag = 'scoped memory for tpu_custom_call.1']
    %11 = vsyncpa [#allocation3], 0
    // Predicated region
    $region2: #{tpu_custom_call.1} parent=1 // pred_check
      _
    $region3: #{tpu_custom_call.1} parent=1 // pred_check_branch
      %13 = sbr.rel (0) target = $region5
    $region4: #{tpu_custom_call.1} parent=1 // pred_region
      _
    $region5: #{tpu_custom_call.1} parent=1 // pred_fallthru
      _
    // Predicated region
    $region6: #{tpu_custom_call.1} parent=1 // pred_check
      _
    $region7: #{tpu_custom_call.1} parent=1 // pred_check_branch
      %15 = sbr.rel (0) target = $region9
    $region8: #{tpu_custom_call.1} parent=1 // pred_region
      _
    $region9: #{tpu_custom_call.1} parent=1 // pred_fallthru
      _
    // Predicated region
    $region10: #{tpu_custom_call.1} parent=1 // pred_check
      _
    $region11: #{tpu_custom_call.1} parent=1 // pred_check_branch
      %17 = sbr.rel (0) target = $region13
    $region12: #{tpu_custom_call.1} parent=1 // pred_region
      _
    $region13: #{tpu_custom_call.1} parent=1 // pred_fallthru
      _
    // Predicated region
    $region14: #{tpu_custom_call.1} parent=1 // pred_check
      _
    $region15: #{tpu_custom_call.1} parent=1 // pred_check_branch
      %19 = sbr.rel (0) target = $region17
    $region16: #{tpu_custom_call.1} parent=1 // pred_region
      _
    $region17: #{tpu_custom_call.1} parent=1 // pred_fallthru
      _
    // Predicated region
    $region18: #{tpu_custom_call.1} parent=1 // pred_check
      _
    $region19: #{tpu_custom_call.1} parent=1 // pred_check_branch
      %21 = sbr.rel (0) target = $region21
    $region20: #{tpu_custom_call.1} parent=1 // pred_region
      _
    $region21: #{tpu_custom_call.1} parent=1 // pred_fallthru
      _
    // Predicated region
    $region22: #{tpu_custom_call.1} parent=1 // pred_check
      _
    $region23: #{tpu_custom_call.1} parent=1 // pred_check_branch
      %23 = sbr.rel (0) target = $region25
    $region24: #{tpu_custom_call.1} parent=1 // pred_region
      _
    $region25: #{tpu_custom_call.1} parent=1 // pred_fallthru
      _
    %v24 = vlaneseq
    %v25 = vshrl.u32 %v24, 7
    %v26 = vadd.s32 %v25, 8
    %v27 = vadd.s32 %v25, 16
    %v28 = vadd.s32 %v25, 24
    %v29 = vld [vmem:[%s2] sm:$0xff]
    %v30 = vld [vmem:[%s2 + $0x8] sm:$0x1]
    %v31 = vld [vmem:[%s3] sm:$0xff]
    %v32 = vld [vmem:[%s3 + $0x8] sm:$0x1]
    %v33 = vld [vmem:[%s0] sm:$0x1]
    %v34 = vlaneseq
    %v35 = vshrl.u32 %v34, 7
    %v36 = vsub.s32 0, %v35
    %v37 = vrot.slane %v33, %v36
    %vm38 = vcmp.eq.s32.totalorder %v25, %v37
    %vm39 = vcmp.eq.s32.totalorder %v26, %v37
    %vm40 = vcmp.eq.s32.totalorder %v27, %v37
    %vm41 = vcmp.eq.s32.totalorder %v28, %v37
    %v42 = vsel %vm38, 1, 0
    %v43 = vsel %vm39, 1, 0
    %v44 = vsel %vm40, 1, 0
    %v45 = vsel %vm41, 1, 0
    %v46 = vcvt.s32.f32 %v42
    %v47 = vcvt.s32.f32 %v43
    %v48 = vcvt.s32.f32 %v44
    %v49 = vcvt.s32.f32 %v45
    %vm50 = vcmask 261120
    %v52 = vsel %vm50, %v31, 0
    %v55 = vsel %vm50, %v32, 0
    %57 = vmatprep.subr.mxu0 0.0
    %58 = vmatpush1.msra.mxu0 %v46
    %59 = vmatprep.subr.mxu0 0.0
    %60 = vmatpush1.msra.mxu0 %v47
    %61 = vmatprep.subr.mxu0 0.0
    %62 = vmatpush1.msra.mxu0 %v48
    %63 = vmatprep.subr.mxu0 0.0
    %64 = vmatpush1.msra.mxu0 %v49
    %65 = vmatprep.subr.mxu0 0.0
    %66 = vmatpush1.msra.mxu0 0.0
    %67 = vmatprep.subr.mxu0 0.0
    %68 = vmatpush1.msra.mxu0 0.0
    %69 = vmatprep.subr.mxu0 0.0
    %70 = vmatpush1.msra.mxu0 0.0
    %71 = vmatprep.subr.mxu0 0.0
    %72 = vmatpush1.msra.mxu0 0.0
    %73 = vmatprep.subr.mxu0 0.0
    %74 = vmatpush1.msra.mxu0 0.0
    %75 = vmatprep.subr.mxu0 0.0
    %76 = vmatpush1.msra.mxu0 0.0
    %77 = vmatprep.subr.mxu0 0.0
    %78 = vmatpush1.msra.mxu0 0.0
    %79 = vmatprep.subr.mxu0 0.0
    %80 = vmatpush1.msra.mxu0 0.0
    %81 = vmatprep.subr.mxu0 0.0
    %82 = vmatpush1.msra.mxu0 0.0
    %83 = vmatprep.subr.mxu0 0.0
    %84 = vmatpush1.msra.mxu0 0.0
    %85 = vmatprep.subr.mxu0 0.0
    %86 = vmatpush1.msra.mxu0 0.0
    %87 = vmatprep.subr.mxu0 0.0
    %88 = vmatpush1.msra.mxu0 0.0
    %89 = vmatprep.subr.mxu0 0.0
    %90 = vmatpush1.msra.mxu0 0.0
    %91 = vmatprep.subr.mxu0 0.0
    %92 = vmatpush1.msra.mxu0 0.0
    %93 = vmatprep.subr.mxu0 0.0
    %94 = vmatpush1.msra.mxu0 0.0
    %95 = vmatprep.subr.mxu0 0.0
    %96 = vmatpush1.msra.mxu0 0.0
    %97 = vmatprep.subr.mxu0 0.0
    %98 = vmatpush1.msra.mxu0 0.0
    %99 = vmatprep.subr.mxu0 0.0
    %100 = vmatpush1.msra.mxu0 0.0
    %101 = vmatprep.subr.mxu0 0.0
    %102 = vmatpush1.msra.mxu0 0.0
    %103 = vmatprep.subr.mxu0 0.0
    %104 = vmatpush1.msra.mxu0 0.0
    %105 = vmatprep.subr.mxu0 0.0
    %106 = vmatpush1.msra.mxu0 0.0
    %107 = vmatprep.subr.mxu0 0.0
    %108 = vmatpush1.msra.mxu0 0.0
    %109 = vmatprep.subr.mxu0 0.0
    %110 = vmatpush1.msra.mxu0 0.0
    %111 = vmatprep.subr.mxu0 0.0
    %112 = vmatpush1.msra.mxu0 0.0
    %113 = vmatprep.subr.mxu0 0.0
    %114 = vmatpush1.msra.mxu0 0.0
    %115 = vmatprep.subr.mxu0 0.0
    %116 = vmatpush1.msra.mxu0 0.0
    %117 = vmatprep.subr.mxu0 0.0
    %118 = vmatpush1.msra.mxu0 0.0
    %119 = vmatprep.subr.mxu0 0.0
    %120 = vmatpush1.msra.mxu0 0.0
    %121 = vmatprep.mubr.f32.mxu0 0.0
    %122 = vmatmul.mubr.f32.gmra.mrb[0].mxu0 %v52
    %v123 = vpop.f32.mrb[0].mxu0
    %v124 = vadd.f32 0.0, %v123
    %v125 = vpop.f32.mrb[0].mxu0
    %126 = vmatprep.mubr.f32.mxu0 0.0
    %127 = vmatmul.mubr.f32.gmra.mrb[0].mxu0 %v55
    %v128 = vpop.f32.mrb[0].mxu0
    %v129 = vadd.f32 0.0, %v128
    %v130 = vpop.f32.mrb[0].mxu0
    %131 = vdwg.mxu0
    %v132 = vmul.f32 %v124, 0.5
    %v133 = vmul.f32 %v129, 0.5
    %v134 = vmul.f32 %v132, 1.442695
    %v135 = vpow.pop %v134
    %v136 = vmul.f32 %v133, 1.442695
    %v137 = vpow.pop %v136
    %v138 = vld [vmem:[%s1] sm:$0xff]
    %v139 = vld [vmem:[%s1 + $0x8] sm:$0x1]
    %v140 = vmul.f32 %v135, %v138
    %v141 = vmul.f32 %v137, %v139
    %v143 = vsel %vm50, %v29, 0
    %v146 = vsel %vm50, %v30, 0
    %148 = vmatprep.subr.mxu0 0.0
    %149 = vmatpush1.msra.mxu0 %v46
    %150 = vmatprep.subr.mxu0 0.0
    %151 = vmatpush1.msra.mxu0 %v47
    %152 = vmatprep.subr.mxu0 0.0
    %153 = vmatpush1.msra.mxu0 %v48
    %154 = vmatprep.subr.mxu0 0.0
    %155 = vmatpush1.msra.mxu0 %v49
    %156 = vmatprep.subr.mxu0 0.0
    %157 = vmatpush1.msra.mxu0 0.0
    %158 = vmatprep.subr.mxu0 0.0
    %159 = vmatpush1.msra.mxu0 0.0
    %160 = vmatprep.subr.mxu0 0.0
    %161 = vmatpush1.msra.mxu0 0.0
    %162 = vmatprep.subr.mxu0 0.0
    %163 = vmatpush1.msra.mxu0 0.0
    %164 = vmatprep.subr.mxu0 0.0
    %165 = vmatpush1.msra.mxu0 0.0
    %166 = vmatprep.subr.mxu0 0.0
    %167 = vmatpush1.msra.mxu0 0.0
    %168 = vmatprep.subr.mxu0 0.0
    %169 = vmatpush1.msra.mxu0 0.0
    %170 = vmatprep.subr.mxu0 0.0
    %171 = vmatpush1.msra.mxu0 0.0
    %172 = vmatprep.subr.mxu0 0.0
    %173 = vmatpush1.msra.mxu0 0.0
    %174 = vmatprep.subr.mxu0 0.0
    %175 = vmatpush1.msra.mxu0 0.0
    %176 = vmatprep.subr.mxu0 0.0
    %177 = vmatpush1.msra.mxu0 0.0
    %178 = vmatprep.subr.mxu0 0.0
    %179 = vmatpush1.msra.mxu0 0.0
    %180 = vmatprep.subr.mxu0 0.0
    %181 = vmatpush1.msra.mxu0 0.0
    %182 = vmatprep.subr.mxu0 0.0
    %183 = vmatpush1.msra.mxu0 0.0
    %184 = vmatprep.subr.mxu0 0.0
    %185 = vmatpush1.msra.mxu0 0.0
    %186 = vmatprep.subr.mxu0 0.0
    %187 = vmatpush1.msra.mxu0 0.0
    %188 = vmatprep.subr.mxu0 0.0
    %189 = vmatpush1.msra.mxu0 0.0
    %190 = vmatprep.subr.mxu0 0.0
    %191 = vmatpush1.msra.mxu0 0.0
    %192 = vmatprep.subr.mxu0 0.0
    %193 = vmatpush1.msra.mxu0 0.0
    %194 = vmatprep.subr.mxu0 0.0
    %195 = vmatpush1.msra.mxu0 0.0
    %196 = vmatprep.subr.mxu0 0.0
    %197 = vmatpush1.msra.mxu0 0.0
    %198 = vmatprep.subr.mxu0 0.0
    %199 = vmatpush1.msra.mxu0 0.0
    %200 = vmatprep.subr.mxu0 0.0
    %201 = vmatpush1.msra.mxu0 0.0
    %202 = vmatprep.subr.mxu0 0.0
    %203 = vmatpush1.msra.mxu0 0.0
    %204 = vmatprep.subr.mxu0 0.0
    %205 = vmatpush1.msra.mxu0 0.0
    %206 = vmatprep.subr.mxu0 0.0
    %207 = vmatpush1.msra.mxu0 0.0
    %208 = vmatprep.subr.mxu0 0.0
    %209 = vmatpush1.msra.mxu0 0.0
    %210 = vmatprep.subr.mxu0 0.0
    %211 = vmatpush1.msra.mxu0 0.0
    %212 = vmatprep.mubr.f32.mxu0 0.0
    %213 = vmatmul.mubr.f32.gmra.mrb[0].mxu0 %v143
    %v214 = vpop.f32.mrb[0].mxu0
    %v215 = vadd.f32 %v140, %v214
    %v216 = vpop.f32.mrb[0].mxu0
    %217 = vmatprep.mubr.f32.mxu0 0.0
    %218 = vmatmul.mubr.f32.gmra.mrb[0].mxu0 %v146
    %v219 = vpop.f32.mrb[0].mxu0
    %v220 = vadd.f32 %v141, %v219
    %v221 = vpop.f32.mrb[0].mxu0
    %222 = vdwg.mxu0
    %v223 = vld [vmem:[%s0 + $0x1] sm:$0x1]
    %v224 = vlaneseq
    %v225 = vshrl.u32 %v224, 7
    %v226 = vsub.s32 0, %v225
    %v227 = vrot.slane %v223, %v226
    %vm228 = vcmp.eq.s32.totalorder %v25, %v227
    %vm229 = vcmp.eq.s32.totalorder %v26, %v227
    %vm230 = vcmp.eq.s32.totalorder %v27, %v227
    %vm231 = vcmp.eq.s32.totalorder %v28, %v227
    %v232 = vsel %vm228, 1, 0
    %v233 = vsel %vm229, 1, 0
    %v234 = vsel %vm230, 1, 0
    %v235 = vsel %vm231, 1, 0
    %v236 = vcvt.s32.f32 %v232
    %v237 = vcvt.s32.f32 %v233
    %v238 = vcvt.s32.f32 %v234
    %v239 = vcvt.s32.f32 %v235
    %240 = vmatprep.subr.mxu0 0.0
    %241 = vmatpush1.msra.mxu0 %v236
    %242 = vmatprep.subr.mxu0 0.0
    %243 = vmatpush1.msra.mxu0 %v237
    %244 = vmatprep.subr.mxu0 0.0
    %245 = vmatpush1.msra.mxu0 %v238
    %246 = vmatprep.subr.mxu0 0.0
    %247 = vmatpush1.msra.mxu0 %v239
    %248 = vmatprep.subr.mxu0 0.0
    %249 = vmatpush1.msra.mxu0 0.0
    %250 = vmatprep.subr.mxu0 0.0
    %251 = vmatpush1.msra.mxu0 0.0
    %252 = vmatprep.subr.mxu0 0.0
    %253 = vmatpush1.msra.mxu0 0.0
    %254 = vmatprep.subr.mxu0 0.0
    %255 = vmatpush1.msra.mxu0 0.0
    %256 = vmatprep.subr.mxu0 0.0
    %257 = vmatpush1.msra.mxu0 0.0
    %258 = vmatprep.subr.mxu0 0.0
    %259 = vmatpush1.msra.mxu0 0.0
    %260 = vmatprep.subr.mxu0 0.0
    %261 = vmatpush1.msra.mxu0 0.0
    %262 = vmatprep.subr.mxu0 0.0
    %263 = vmatpush1.msra.mxu0 0.0
    %264 = vmatprep.subr.mxu0 0.0
    %265 = vmatpush1.msra.mxu0 0.0
    %266 = vmatprep.subr.mxu0 0.0
    %267 = vmatpush1.msra.mxu0 0.0
    %268 = vmatprep.subr.mxu0 0.0
    %269 = vmatpush1.msra.mxu0 0.0
    %270 = vmatprep.subr.mxu0 0.0
    %271 = vmatpush1.msra.mxu0 0.0
    %272 = vmatprep.subr.mxu0 0.0
    %273 = vmatpush1.msra.mxu0 0.0
    %274 = vmatprep.subr.mxu0 0.0
    %275 = vmatpush1.msra.mxu0 0.0
    %276 = vmatprep.subr.mxu0 0.0
    %277 = vmatpush1.msra.mxu0 0.0
    %278 = vmatprep.subr.mxu0 0.0
    %279 = vmatpush1.msra.mxu0 0.0
    %280 = vmatprep.subr.mxu0 0.0
    %281 = vmatpush1.msra.mxu0 0.0
    %282 = vmatprep.subr.mxu0 0.0
    %283 = vmatpush1.msra.mxu0 0.0
    %284 = vmatprep.subr.mxu0 0.0
    %285 = vmatpush1.msra.mxu0 0.0
    %286 = vmatprep.subr.mxu0 0.0
    %287 = vmatpush1.msra.mxu0 0.0
    %288 = vmatprep.subr.mxu0 0.0
    %289 = vmatpush1.msra.mxu0 0.0
    %290 = vmatprep.subr.mxu0 0.0
    %291 = vmatpush1.msra.mxu0 0.0
    %292 = vmatprep.subr.mxu0 0.0
    %293 = vmatpush1.msra.mxu0 0.0
    %294 = vmatprep.subr.mxu0 0.0
    %295 = vmatpush1.msra.mxu0 0.0
    %296 = vmatprep.subr.mxu0 0.0
    %297 = vmatpush1.msra.mxu0 0.0
    %298 = vmatprep.subr.mxu0 0.0
    %299 = vmatpush1.msra.mxu0 0.0
    %300 = vmatprep.subr.mxu0 0.0
    %301 = vmatpush1.msra.mxu0 0.0
    %302 = vmatprep.subr.mxu0 0.0
    %303 = vmatpush1.msra.mxu0 0.0
    %304 = vmatprep.mubr.f32.mxu0 0.0
    %305 = vmatmul.mubr.f32.gmra.mrb[0].mxu0 %v52
    %v306 = vpop.f32.mrb[0].mxu0
    %v307 = vadd.f32 0.0, %v306
    %v308 = vpop.f32.mrb[0].mxu0
    %309 = vmatprep.mubr.f32.mxu0 0.0
    %310 = vmatmul.mubr.f32.gmra.mrb[0].mxu0 %v55
    %v311 = vpop.f32.mrb[0].mxu0
    %v312 = vadd.f32 0.0, %v311
    %v313 = vpop.f32.mrb[0].mxu0
    %314 = vdwg.mxu0
    %v315 = vmul.f32 %v307, 0.5
    %v316 = vmul.f32 %v312, 0.5
    %v317 = vmul.f32 %v315, 1.442695
    %v318 = vpow.pop %v317
    %v319 = vmul.f32 %v316, 1.442695
    %v320 = vpow.pop %v319
    %s321 = scalar_lea.vmem %s1, 16
    %v322 = vld [vmem:[%s321] sm:$0xff]
    %v323 = vld [vmem:[%s321 + $0x8] sm:$0x1]
    %v324 = vmul.f32 %v318, %v322
    %v325 = vmul.f32 %v320, %v323
    %326 = vmatprep.subr.mxu0 0.0
    %327 = vmatpush1.msra.mxu0 %v236
    %328 = vmatprep.subr.mxu0 0.0
    %329 = vmatpush1.msra.mxu0 %v237
    %330 = vmatprep.subr.mxu0 0.0
    %331 = vmatpush1.msra.mxu0 %v238
    %332 = vmatprep.subr.mxu0 0.0
    %333 = vmatpush1.msra.mxu0 %v239
    %334 = vmatprep.subr.mxu0 0.0
    %335 = vmatpush1.msra.mxu0 0.0
    %336 = vmatprep.subr.mxu0 0.0
    %337 = vmatpush1.msra.mxu0 0.0
    %338 = vmatprep.subr.mxu0 0.0
    %339 = vmatpush1.msra.mxu0 0.0
    %340 = vmatprep.subr.mxu0 0.0
    %341 = vmatpush1.msra.mxu0 0.0
    %342 = vmatprep.subr.mxu0 0.0
    %343 = vmatpush1.msra.mxu0 0.0
    %344 = vmatprep.subr.mxu0 0.0
    %345 = vmatpush1.msra.mxu0 0.0
    %346 = vmatprep.subr.mxu0 0.0
    %347 = vmatpush1.msra.mxu0 0.0
    %348 = vmatprep.subr.mxu0 0.0
    %349 = vmatpush1.msra.mxu0 0.0
    %350 = vmatprep.subr.mxu0 0.0
    %351 = vmatpush1.msra.mxu0 0.0
    %352 = vmatprep.subr.mxu0 0.0
    %353 = vmatpush1.msra.mxu0 0.0
    %354 = vmatprep.subr.mxu0 0.0
    %355 = vmatpush1.msra.mxu0 0.0
    %356 = vmatprep.subr.mxu0 0.0
    %357 = vmatpush1.msra.mxu0 0.0
    %358 = vmatprep.subr.mxu0 0.0
    %359 = vmatpush1.msra.mxu0 0.0
    %360 = vmatprep.subr.mxu0 0.0
    %361 = vmatpush1.msra.mxu0 0.0
    %362 = vmatprep.subr.mxu0 0.0
    %363 = vmatpush1.msra.mxu0 0.0
    %364 = vmatprep.subr.mxu0 0.0
    %365 = vmatpush1.msra.mxu0 0.0
    %366 = vmatprep.subr.mxu0 0.0
    %367 = vmatpush1.msra.mxu0 0.0
    %368 = vmatprep.subr.mxu0 0.0
    %369 = vmatpush1.msra.mxu0 0.0
    %370 = vmatprep.subr.mxu0 0.0
    %371 = vmatpush1.msra.mxu0 0.0
    %372 = vmatprep.subr.mxu0 0.0
    %373 = vmatpush1.msra.mxu0 0.0
    %374 = vmatprep.subr.mxu0 0.0
    %375 = vmatpush1.msra.mxu0 0.0
    %376 = vmatprep.subr.mxu0 0.0
    %377 = vmatpush1.msra.mxu0 0.0
    %378 = vmatprep.subr.mxu0 0.0
    %379 = vmatpush1.msra.mxu0 0.0
    %380 = vmatprep.subr.mxu0 0.0
    %381 = vmatpush1.msra.mxu0 0.0
    %382 = vmatprep.subr.mxu0 0.0
    %383 = vmatpush1.msra.mxu0 0.0
    %384 = vmatprep.subr.mxu0 0.0
    %385 = vmatpush1.msra.mxu0 0.0
    %386 = vmatprep.subr.mxu0 0.0
    %387 = vmatpush1.msra.mxu0 0.0
    %388 = vmatprep.subr.mxu0 0.0
    %389 = vmatpush1.msra.mxu0 0.0
    %390 = vmatprep.mubr.f32.mxu0 0.0
    %391 = vmatmul.mubr.f32.gmra.mrb[0].mxu0 %v143
    %v392 = vpop.f32.mrb[0].mxu0
    %v393 = vadd.f32 %v324, %v392
    %v394 = vpop.f32.mrb[0].mxu0
    %395 = vmatprep.mubr.f32.mxu0 0.0
    %396 = vmatmul.mubr.f32.gmra.mrb[0].mxu0 %v146
    %v397 = vpop.f32.mrb[0].mxu0
    %v398 = vadd.f32 %v325, %v397
    %v399 = vpop.f32.mrb[0].mxu0
    %400 = vdwg.mxu0
    %v401 = vld [vmem:[%s0 + $0x2] sm:$0x1]
    %v402 = vlaneseq
    %v403 = vshrl.u32 %v402, 7
    %v404 = vsub.s32 0, %v403
    %v405 = vrot.slane %v401, %v404
    %vm406 = vcmp.eq.s32.totalorder %v25, %v405
    %vm407 = vcmp.eq.s32.totalorder %v26, %v405
    %vm408 = vcmp.eq.s32.totalorder %v27, %v405
    %vm409 = vcmp.eq.s32.totalorder %v28, %v405
    %v410 = vsel %vm406, 1, 0
    %v411 = vsel %vm407, 1, 0
    %v412 = vsel %vm408, 1, 0
    %v413 = vsel %vm409, 1, 0
    %v414 = vcvt.s32.f32 %v410
    %v415 = vcvt.s32.f32 %v411
    %v416 = vcvt.s32.f32 %v412
    %v417 = vcvt.s32.f32 %v413
    %418 = vmatprep.subr.mxu0 0.0
    %419 = vmatpush1.msra.mxu0 %v414
    %420 = vmatprep.subr.mxu0 0.0
    %421 = vmatpush1.msra.mxu0 %v415
    %422 = vmatprep.subr.mxu0 0.0
    %423 = vmatpush1.msra.mxu0 %v416
    %424 = vmatprep.subr.mxu0 0.0
    %425 = vmatpush1.msra.mxu0 %v417
    %426 = vmatprep.subr.mxu0 0.0
    %427 = vmatpush1.msra.mxu0 0.0
    %428 = vmatprep.subr.mxu0 0.0
    %429 = vmatpush1.msra.mxu0 0.0
    %430 = vmatprep.subr.mxu0 0.0
    %431 = vmatpush1.msra.mxu0 0.0
    %432 = vmatprep.subr.mxu0 0.0
    %433 = vmatpush1.msra.mxu0 0.0
    %434 = vmatprep.subr.mxu0 0.0
    %435 = vmatpush1.msra.mxu0 0.0
    %436 = vmatprep.subr.mxu0 0.0
    %437 = vmatpush1.msra.mxu0 0.0
    %438 = vmatprep.subr.mxu0 0.0
    %439 = vmatpush1.msra.mxu0 0.0
    %440 = vmatprep.subr.mxu0 0.0
    %441 = vmatpush1.msra.mxu0 0.0
    %442 = vmatprep.subr.mxu0 0.0
    %443 = vmatpush1.msra.mxu0 0.0
    %444 = vmatprep.subr.mxu0 0.0
    %445 = vmatpush1.msra.mxu0 0.0
    %446 = vmatprep.subr.mxu0 0.0
    %447 = vmatpush1.msra.mxu0 0.0
    %448 = vmatprep.subr.mxu0 0.0
    %449 = vmatpush1.msra.mxu0 0.0
    %450 = vmatprep.subr.mxu0 0.0
    %451 = vmatpush1.msra.mxu0 0.0
    %452 = vmatprep.subr.mxu0 0.0
    %453 = vmatpush1.msra.mxu0 0.0
    %454 = vmatprep.subr.mxu0 0.0
    %455 = vmatpush1.msra.mxu0 0.0
    %456 = vmatprep.subr.mxu0 0.0
    %457 = vmatpush1.msra.mxu0 0.0
    %458 = vmatprep.subr.mxu0 0.0
    %459 = vmatpush1.msra.mxu0 0.0
    %460 = vmatprep.subr.mxu0 0.0
    %461 = vmatpush1.msra.mxu0 0.0
    %462 = vmatprep.subr.mxu0 0.0
    %463 = vmatpush1.msra.mxu0 0.0
    %464 = vmatprep.subr.mxu0 0.0
    %465 = vmatpush1.msra.mxu0 0.0
    %466 = vmatprep.subr.mxu0 0.0
    %467 = vmatpush1.msra.mxu0 0.0
    %468 = vmatprep.subr.mxu0 0.0
    %469 = vmatpush1.msra.mxu0 0.0
    %470 = vmatprep.subr.mxu0 0.0
    %471 = vmatpush1.msra.mxu0 0.0
    %472 = vmatprep.subr.mxu0 0.0
    %473 = vmatpush1.msra.mxu0 0.0
    %474 = vmatprep.subr.mxu0 0.0
    %475 = vmatpush1.msra.mxu0 0.0
    %476 = vmatprep.subr.mxu0 0.0
    %477 = vmatpush1.msra.mxu0 0.0
    %478 = vmatprep.subr.mxu0 0.0
    %479 = vmatpush1.msra.mxu0 0.0
    %480 = vmatprep.subr.mxu0 0.0
    %481 = vmatpush1.msra.mxu0 0.0
    %482 = vmatprep.mubr.f32.mxu0 0.0
    %483 = vmatmul.mubr.f32.gmra.mrb[0].mxu0 %v52
    %v484 = vpop.f32.mrb[0].mxu0
    %v485 = vadd.f32 0.0, %v484
    %v486 = vpop.f32.mrb[0].mxu0
    %487 = vmatprep.mubr.f32.mxu0 0.0
    %488 = vmatmul.mubr.f32.gmra.mrb[0].mxu0 %v55
    %v489 = vpop.f32.mrb[0].mxu0
    %v490 = vpop.f32.mrb[0].mxu0
    %491 = vdwg.mxu0
    %v492 = vmul.f32 %v485, 0.5
    %v493 = vmul.f32 %v492, 1.442695
    %v494 = vpow.pop %v493
    %s495 = scalar_lea.vmem %s1, 32
    %v496 = vld [vmem:[%s495] sm:$0xff]
    %v497 = vmul.f32 %v494, %v496
    %498 = vmatprep.subr.mxu0 0.0
    %499 = vmatpush1.msra.mxu0 %v414
    %500 = vmatprep.subr.mxu0 0.0
    %501 = vmatpush1.msra.mxu0 %v415
    %502 = vmatprep.subr.mxu0 0.0
    %503 = vmatpush1.msra.mxu0 %v416
    %504 = vmatprep.subr.mxu0 0.0
    %505 = vmatpush1.msra.mxu0 %v417
    %506 = vmatprep.subr.mxu0 0.0
    %507 = vmatpush1.msra.mxu0 0.0
    %508 = vmatprep.subr.mxu0 0.0
    %509 = vmatpush1.msra.mxu0 0.0
    %510 = vmatprep.subr.mxu0 0.0
    %511 = vmatpush1.msra.mxu0 0.0
    %512 = vmatprep.subr.mxu0 0.0
    %513 = vmatpush1.msra.mxu0 0.0
    %514 = vmatprep.subr.mxu0 0.0
    %515 = vmatpush1.msra.mxu0 0.0
    %516 = vmatprep.subr.mxu0 0.0
    %517 = vmatpush1.msra.mxu0 0.0
    %518 = vmatprep.subr.mxu0 0.0
    %519 = vmatpush1.msra.mxu0 0.0
    %520 = vmatprep.subr.mxu0 0.0
    %521 = vmatpush1.msra.mxu0 0.0
    %522 = vmatprep.subr.mxu0 0.0
    %523 = vmatpush1.msra.mxu0 0.0
    %524 = vmatprep.subr.mxu0 0.0
    %525 = vmatpush1.msra.mxu0 0.0
    %526 = vmatprep.subr.mxu0 0.0
    %527 = vmatpush1.msra.mxu0 0.0
    %528 = vmatprep.subr.mxu0 0.0
    %529 = vmatpush1.msra.mxu0 0.0
    %530 = vmatprep.subr.mxu0 0.0
    %531 = vmatpush1.msra.mxu0 0.0
    %532 = vmatprep.subr.mxu0 0.0
    %533 = vmatpush1.msra.mxu0 0.0
    %534 = vmatprep.subr.mxu0 0.0
    %535 = vmatpush1.msra.mxu0 0.0
    %536 = vmatprep.subr.mxu0 0.0
    %537 = vmatpush1.msra.mxu0 0.0
    %538 = vmatprep.subr.mxu0 0.0
    %539 = vmatpush1.msra.mxu0 0.0
    %540 = vmatprep.subr.mxu0 0.0
    %541 = vmatpush1.msra.mxu0 0.0
    %542 = vmatprep.subr.mxu0 0.0
    %543 = vmatpush1.msra.mxu0 0.0
    %544 = vmatprep.subr.mxu0 0.0
    %545 = vmatpush1.msra.mxu0 0.0
    %546 = vmatprep.subr.mxu0 0.0
    %547 = vmatpush1.msra.mxu0 0.0
    %548 = vmatprep.subr.mxu0 0.0
    %549 = vmatpush1.msra.mxu0 0.0
    %550 = vmatprep.subr.mxu0 0.0
    %551 = vmatpush1.msra.mxu0 0.0
    %552 = vmatprep.subr.mxu0 0.0
    %553 = vmatpush1.msra.mxu0 0.0
    %554 = vmatprep.subr.mxu0 0.0
    %555 = vmatpush1.msra.mxu0 0.0
    %556 = vmatprep.subr.mxu0 0.0
    %557 = vmatpush1.msra.mxu0 0.0
    %558 = vmatprep.subr.mxu0 0.0
    %559 = vmatpush1.msra.mxu0 0.0
    %560 = vmatprep.subr.mxu0 0.0
    %561 = vmatpush1.msra.mxu0 0.0
    %562 = vmatprep.mubr.f32.mxu0 0.0
    %563 = vmatmul.mubr.f32.gmra.mrb[0].mxu0 %v143
    %v564 = vpop.f32.mrb[0].mxu0
    %v565 = vadd.f32 %v497, %v564
    %v566 = vpop.f32.mrb[0].mxu0
    %567 = vmatprep.mubr.f32.mxu0 0.0
    %568 = vmatmul.mubr.f32.gmra.mrb[0].mxu0 %v146
    %v569 = vpop.f32.mrb[0].mxu0
    %v570 = vpop.f32.mrb[0].mxu0
    %571 = vdwg.mxu0
    %v572 = vld [vmem:[%s4] sm:$0xff]
    %v573 = vld [vmem:[%s5] sm:$0xff]
    %575 = vset.pattern.permute.xlu0 0
    %576 = vperm.xlu0 %575, %v573
    %v577 = vpop.permute.xlu0 %576
    %vm579 = vcmask 64512
    %v581 = vsel %vm579, %v572, 0
    %583 = vmatprep.subr.mxu0 0.0
    %584 = vmatpush1.msra.mxu0 %v565
    %585 = vmatprep.subr.mxu0 0.0
    %586 = vmatpush1.msra.mxu0 0.0
    %587 = vmatprep.subr.mxu0 0.0
    %588 = vmatpush1.msra.mxu0 0.0
    %589 = vmatprep.subr.mxu0 0.0
    %590 = vmatpush1.msra.mxu0 0.0
    %591 = vmatprep.subr.mxu0 0.0
    %592 = vmatpush1.msra.mxu0 0.0
    %593 = vmatprep.subr.mxu0 0.0
    %594 = vmatpush1.msra.mxu0 0.0
    %595 = vmatprep.subr.mxu0 0.0
    %596 = vmatpush1.msra.mxu0 0.0
    %597 = vmatprep.subr.mxu0 0.0
    %598 = vmatpush1.msra.mxu0 0.0
    %599 = vmatprep.subr.mxu0 0.0
    %600 = vmatpush1.msra.mxu0 0.0
    %601 = vmatprep.subr.mxu0 0.0
    %602 = vmatpush1.msra.mxu0 0.0
    %603 = vmatprep.subr.mxu0 0.0
    %604 = vmatpush1.msra.mxu0 0.0
    %605 = vmatprep.subr.mxu0 0.0
    %606 = vmatpush1.msra.mxu0 0.0
    %607 = vmatprep.subr.mxu0 0.0
    %608 = vmatpush1.msra.mxu0 0.0
    %609 = vmatprep.subr.mxu0 0.0
    %610 = vmatpush1.msra.mxu0 0.0
    %611 = vmatprep.subr.mxu0 0.0
    %612 = vmatpush1.msra.mxu0 0.0
    %613 = vmatprep.subr.mxu0 0.0
    %614 = vmatpush1.msra.mxu0 0.0
    %615 = vmatprep.subr.mxu0 0.0
    %616 = vmatpush1.msra.mxu0 0.0
    %617 = vmatprep.subr.mxu0 0.0
    %618 = vmatpush1.msra.mxu0 0.0
    %619 = vmatprep.subr.mxu0 0.0
    %620 = vmatpush1.msra.mxu0 0.0
    %621 = vmatprep.subr.mxu0 0.0
    %622 = vmatpush1.msra.mxu0 0.0
    %623 = vmatprep.subr.mxu0 0.0
    %624 = vmatpush1.msra.mxu0 0.0
    %625 = vmatprep.subr.mxu0 0.0
    %626 = vmatpush1.msra.mxu0 0.0
    %627 = vmatprep.subr.mxu0 0.0
    %628 = vmatpush1.msra.mxu0 0.0
    %629 = vmatprep.subr.mxu0 0.0
    %630 = vmatpush1.msra.mxu0 0.0
    %631 = vmatprep.subr.mxu0 0.0
    %632 = vmatpush1.msra.mxu0 0.0
    %633 = vmatprep.subr.mxu0 0.0
    %634 = vmatpush1.msra.mxu0 0.0
    %635 = vmatprep.subr.mxu0 0.0
    %636 = vmatpush1.msra.mxu0 0.0
    %637 = vmatprep.subr.mxu0 0.0
    %638 = vmatpush1.msra.mxu0 0.0
    %639 = vmatprep.subr.mxu0 0.0
    %640 = vmatpush1.msra.mxu0 0.0
    %641 = vmatprep.subr.mxu0 0.0
    %642 = vmatpush1.msra.mxu0 0.0
    %643 = vmatprep.subr.mxu0 0.0
    %644 = vmatpush1.msra.mxu0 0.0
    %645 = vmatprep.subr.mxu0 0.0
    %646 = vmatpush1.msra.mxu0 0.0
    %647 = vmatprep.mubr.f32.mxu0 0.0
    %648 = vmatmul.mubr.f32.gmra.mrb[0].mxu0 %v581
    %v649 = vpop.f32.mrb[0].mxu0
    %v650 = vadd.f32 %v577, %v649
    %v651 = vpop.f32.mrb[0].mxu0
    %652 = vdwg.mxu0
    %v653 = vadd.f32 %v220, %v398
    %v654 = vmul.f32 %v215, %v393
    %v655 = vsel %vm50, %v654, 0.0
    %v656 = vrot.slane %v655, 4
    %v657 = vadd.f32 %v655, %v656
    %v658 = vrot.slane %v657, 2
    %v659 = vadd.f32 %v657, %v658
    %v660 = vrot.slane %v659, 1
    %v661 = vadd.f32 %v659, %v660
    %v662 = vadd.f32 %v653, %v661
    %vm663 = vcmask 257024
    %664 = vst.msk [vmem:[#allocation2] sm:$0xf] %vm663, %v650
    %v665 = vxor.u32 %v650, 2147483648
    %v666 = vmul.f32 %v665, 1.442695
    %v667 = vpow.pop %v666
    %v668 = vadd.f32 %v667, 1.0
    %v669 = vrcp.pop %v668
    %v670 = vmul.f32 1.0, %v669
    %vm671 = vcmask 261124
    %672 = vst.msk [vmem:[#allocation2] sm:$0xf0] %vm671, %v670
    %v673 = vxor.u32 %v662, 2147483648
    %v674 = vmul.f32 %v673, 1.442695
    %v675 = vpow.pop %v674
    %v676 = vadd.f32 %v675, 1.0
    %v677 = vrcp.pop %v676
    %v678 = vmul.f32 1.0, %v677
    %vm679 = vcmask 253952
    %680 = vst.msk [vmem:[#allocation2 + $0x8] sm:$0x1] %vm679, %v678
    // Predicated region
    $region26: #{tpu_custom_call.1} parent=1 // pred_check
      _
    $region27: #{tpu_custom_call.1} parent=1 // pred_check_branch
      %682 = sbr.rel (0) target = $region29
    $region28: #{tpu_custom_call.1} parent=1 // pred_region
      %s684 = ssub.s32 256, 256
      %685 = vsyncadd [#allocation3], %s684
      %s686 = sshll.u32 [#allocation2], 4
      %s687 = int_to_ptr.vmem [resolvable:$true] %s686
      %692 = dma.vmem_to_hbm [thread:$0]  %s687, 256, %s6, [#allocation3], 128, 128, 8
    $region29: #{tpu_custom_call.1} parent=1 // pred_fallthru
      _
    // Predicated region
    $region30: #{tpu_custom_call.1} parent=1 // pred_check
      _
    $region31: #{tpu_custom_call.1} parent=1 // pred_check_branch
      %694 = sbr.rel (0) target = $region33
    $region32: #{tpu_custom_call.1} parent=1 // pred_region
      %695 = dma.done [#allocation3], 256
    $region33: #{tpu_custom_call.1} parent=1 // pred_fallthru
      _
    %696 = vsyncpa [#allocation3], 1

</llo_original>
